<compile_context>
chip_gen: v7x
topology: tpu7x:2x2x1
jax: 0.10.0
libtpu: 0.0.40
codegen_flags: <defaults>
</compile_context>

<pallas_src>
import jax
import jax.numpy as jnp
from jax.experimental import pallas as pl
from jax.experimental.pallas import tpu as pltpu

# Logical sizes (from the module definition).
D_IN = 10 * 3 * 3   # fc1 in_features = 90
H1 = 128            # fc1 out_features
H2 = 16             # fc2 out_features
D_OUT = 10          # fc3 out_features

LANE = 128          # padded feature width for the hidden layers (all K/N <= 128)
_TILE_BUCKETS = (1024, 512, 256, 128, 64, 32, 16, 8)   # fixed set -> few compiles


def _round_up(n, m):
    return ((n + m - 1) // m) * m


def _pad2d(a, rows, cols):
    r, c = a.shape
    return jnp.pad(a, ((0, rows - r), (0, cols - c)))


def _pick_tile_b(B):
    """Bucketed batch tile aiming for >=2 roughly balanced grid steps.

    target ~= ceil(B/2) rounded up to 8, then snapped down to a fixed bucket:
    keeps both v7x TensorCores busy for B > 8, caps the tile at 1024 rows
    (85%+ of HBM roofline per measured Pallas data), and avoids a distinct
    Mosaic compile for every batch size.
    """
    target = max(8, _round_up(-(-B // 2), 8))
    for t in _TILE_BUCKETS:
        if t <= target:
            return t
    return 8


def prepare_params(params):
    """One-time (hoisted) weight padding + packing.

    Returns (wpack, bpack):
      wpack : (3, 128, 128) float32, zero-padded (in, out) weights for fc1/2/3
      bpack : (8, 128) float32, row 0 = b1, row 1 = b2, row 2 = b3 (zero-padded)
    Zero padding is exact: padded K rows/columns contribute 0 to the matmuls
    and padded output columns never reach HBM (output is 10 columns wide).
    """
    w1, b1, w2, b2, w3, b3 = params
    wpack = jnp.stack([
        _pad2d(w1.astype(jnp.float32), LANE, LANE),
        _pad2d(w2.astype(jnp.float32), LANE, LANE),
        _pad2d(w3.astype(jnp.float32), LANE, LANE),
    ])                                                   # (3, 128, 128): 1 DMA
    bpack = jnp.zeros((8, LANE), jnp.float32)
    bpack = bpack.at[0, :H1].set(b1.astype(jnp.float32))
    bpack = bpack.at[1, :H2].set(b2.astype(jnp.float32))
    bpack = bpack.at[2, :D_OUT].set(b3.astype(jnp.float32))
    return (wpack, bpack)


def mlp_kernel(x_ref, w_ref, b_ref, o_ref, xpad_ref):
    # x_ref: (tile_b, 90)  w_ref: (3,128,128)  b_ref: (8,128)  o_ref: (tile_b,10)
    # xpad_ref: (tile_b, 128) VMEM scratch.
    #
    # Zero-pad the 90 input features to 128 lanes entirely in VMEM (no HBM
    # traffic).  Re-zeroed every grid step so it stays correct when the grid is
    # sharded across TensorCores (v7x) — the pad lanes must be 0 for the K
    # padding of W1 to be exact.
    xpad_ref[...] = jnp.zeros_like(xpad_ref)
    xpad_ref[:, :D_IN] = x_ref[...]

    b1 = b_ref[0:1, :]
    b2 = b_ref[1:2, :]
    b3 = b_ref[2:3, :]

    h1 = jnp.maximum(
        jnp.dot(xpad_ref[...], w_ref[0], preferred_element_type=jnp.float32) + b1,
        0.0)
    h2 = jnp.maximum(
        jnp.dot(h1, w_ref[1], preferred_element_type=jnp.float32) + b2, 0.0)
    y = jnp.dot(h2, w_ref[2], preferred_element_type=jnp.float32) + b3
    # Only the first 10 output columns are real; store just those (tiny masked
    # stores per tile, ~12.8x less HBM write traffic than 128 lanes).
    o_ref[...] = y[:, :D_OUT]


@jax.jit
def nnetwork_forward(x_img, packed_params):
    """x_img: (B, 10, 3, 3) float32 -> (B, 10) float32."""
    wpack, bpack = packed_params
    B = x_img.shape[0]

    # Glue (all inside this jit): flatten (matches torch.flatten(start_dim=1)
    # on contiguous NCHW) and zero-pad only the batch rows to a tile multiple.
    # NOTE: no feature pad here — the kernel reads 90 lanes per row from HBM.
    x2d = x_img.reshape(B, -1).astype(jnp.float32)        # (B, 90)
    tile_b = _pick_tile_b(B)
    b_pad = _round_up(B, tile_b)
    xp = jnp.pad(x2d, ((0, b_pad - B), (0, 0)))           # (b_pad, 90)

    out_p = pl.pallas_call(
        mlp_kernel,
        out_shape=jax.ShapeDtypeStruct((b_pad, D_OUT), jnp.float32),
        grid_spec=pltpu.PrefetchScalarGridSpec(
            num_scalar_prefetch=0,
            grid=(b_pad // tile_b,),
            in_specs=[
                # Activations: one batch tile per grid step; last block dim
                # (90) equals the full array dim, so no (8,128) issue.
                pl.BlockSpec((tile_b, D_IN), lambda i: (i, 0)),
                # Packed weights / biases: constant block index -> fetched once
                # and VMEM-resident (weight-stationary) across the whole grid.
                pl.BlockSpec((3, LANE, LANE), lambda i: (0, 0, 0)),
                pl.BlockSpec((8, LANE), lambda i: (0, 0)),
            ],
            out_specs=pl.BlockSpec((tile_b, D_OUT), lambda i: (i, 0)),
            scratch_shapes=[pltpu.VMEM((tile_b, LANE), jnp.float32)],
        ),
        compiler_params=pltpu.CompilerParams(
            dimension_semantics=("parallel",)),
    )(xp, wpack, bpack)
    # Final row-slice stays inside the jit (no extra dispatch / HBM pass).
    return out_p[:B]


def init_params(key):
    """Deterministic synthetic init (PyTorch-style uniform(-1/sqrt(fan_in), +))."""
    ks = jax.random.split(key, 6)

    def lin(kw, kb, fan_in, fan_out):
        bound = 1.0 / jnp.sqrt(jnp.float32(fan_in))
        w = jax.random.uniform(kw, (fan_in, fan_out), jnp.float32, -bound, bound)
        b = jax.random.uniform(kb, (fan_out,), jnp.float32, -bound, bound)
        return w, b

    w1, b1 = lin(ks[0], ks[1], D_IN, H1)
    w2, b2 = lin(ks[2], ks[3], H1, H2)
    w3, b3 = lin(ks[4], ks[5], H2, D_OUT)
    return (w1, b1, w2, b2, w3, b3)


def _reference(x_img, params):
    w1, b1, w2, b2, w3, b3 = params
    x = x_img.reshape(x_img.shape[0], -1)
    x = jnp.maximum(x @ w1 + b1, 0.0)
    x = jnp.maximum(x @ w2 + b2, 0.0)
    return x @ w3 + b3


if __name__ == "__main__":
    key = jax.random.PRNGKey(0)
    k_x, k_p, k_x2 = jax.random.split(key, 3)

    params = init_params(k_p)
    packed = prepare_params(params)   # one-time pad/pack, hoisted out of forward

    # Small input consistent with fc1's 90 = 10*3*3 flattened features (NCHW).
    x_small = jax.random.normal(k_x, (2, 10, 3, 3), dtype=jnp.float32)
    out_small = jax.block_until_ready(nnetwork_forward(x_small, packed))
    ref_small = _reference(x_small, params)
    assert out_small.shape == (2, D_OUT)
    assert jnp.allclose(out_small, ref_small, atol=1e-5, rtol=1e-5)

    # Larger batch exercising the multi-tile grid (tile_b=128, grid=(3,)).
    x_big = jax.random.normal(k_x2, (300, 10, 3, 3), dtype=jnp.float32)
    out_big = jax.block_until_ready(nnetwork_forward(x_big, packed))
    ref_big = _reference(x_big, params)
    assert out_big.shape == (300, D_OUT)
    assert jnp.allclose(out_big, ref_big, atol=1e-4, rtol=1e-4)

    print("KERNEL_OK")
</pallas_src>

<mosaic_0001>
module attributes {stable_mosaic.version = 11 : i64} {
  func.func @mlp_kernel(%arg0: i32, %arg1: memref<8x90xf32, #tpu.memory_space<vmem>>, %arg2: memref<3x128x128xf32, #tpu.memory_space<vmem>>, %arg3: memref<8x128xf32, #tpu.memory_space<vmem>>, %arg4: memref<8x10xf32, #tpu.memory_space<vmem>>, %arg5: memref<8x128xf32, #tpu.memory_space<vmem>>) attributes {dimension_semantics = [#tpu.dimension_semantics<parallel>], iteration_bounds = array<i64: 1>, scalar_prefetch = 0 : i64, scratch_operands = 1 : i64, tpu.core_type = #tpu.core_type<tc>, window_params = [{transform_indices = @transform_0, window_bounds = array<i64: 8, 90>}, {pipeline_mode = #tpu.pipeline_mode<synchronous>, transform_indices = @transform_1, window_bounds = array<i64: 3, 128, 128>}, {pipeline_mode = #tpu.pipeline_mode<synchronous>, transform_indices = @transform_2, window_bounds = array<i64: 8, 128>}, {transform_indices = @transform_3, window_bounds = array<i64: 8, 10>}]} {
    %cst = arith.constant 0.000000e+00 : f32
    %0 = vector.broadcast %cst : f32 to vector<8x128xf32>
    %c0 = arith.constant 0 : index
    %c0_0 = arith.constant 0 : index
    %1 = vector.load %arg5[%c0, %c0_0] : memref<8x128xf32, #tpu.memory_space<vmem>>, vector<8x128xf32>
    tpu.vector_store %arg5[%c0, %c0_0], %0 {strides = array<i32>} : memref<8x128xf32, #tpu.memory_space<vmem>>, vector<8x128xf32>,
    %c0_1 = arith.constant 0 : index
    %c0_2 = arith.constant 0 : index
    %2 = vector.load %arg1[%c0_1, %c0_2] : memref<8x90xf32, #tpu.memory_space<vmem>>, vector<8x90xf32>
    %c0_3 = arith.constant 0 : index
    %c0_4 = arith.constant 0 : index
    %3 = vector.load %arg5[%c0_3, %c0_4] : memref<8x128xf32, #tpu.memory_space<vmem>>, vector<8x90xf32>
    tpu.vector_store %arg5[%c0_3, %c0_4], %2 {strides = array<i32>} : memref<8x128xf32, #tpu.memory_space<vmem>>, vector<8x90xf32>,
    %c0_5 = arith.constant 0 : index
    %c0_6 = arith.constant 0 : index
    %4 = vector.load %arg3[%c0_5, %c0_6] : memref<8x128xf32, #tpu.memory_space<vmem>>, vector<1x128xf32>
    %c1 = arith.constant 1 : index
    %c0_7 = arith.constant 0 : index
    %5 = vector.load %arg3[%c1, %c0_7] : memref<8x128xf32, #tpu.memory_space<vmem>>, vector<1x128xf32>
    %c2 = arith.constant 2 : index
    %c0_8 = arith.constant 0 : index
    %6 = vector.load %arg3[%c2, %c0_8] : memref<8x128xf32, #tpu.memory_space<vmem>>, vector<1x128xf32>
    %c0_9 = arith.constant 0 : index
    %c0_10 = arith.constant 0 : index
    %7 = vector.load %arg5[%c0_9, %c0_10] : memref<8x128xf32, #tpu.memory_space<vmem>>, vector<8x128xf32>
    %c0_11 = arith.constant 0 : index
    %c0_12 = arith.constant 0 : index
    %c0_13 = arith.constant 0 : index
    %8 = vector.load %arg2[%c0_11, %c0_12, %c0_13] : memref<3x128x128xf32, #tpu.memory_space<vmem>>, vector<1x128x128xf32>
    %9 = vector.shape_cast %8 : vector<1x128x128xf32> to vector<128x128xf32>
    %cst_14 = arith.constant dense<0.000000e+00> : vector<8x128xf32>
    %10 = tpu.matmul %7, %9, %cst_14 {dimension_numbers = #tpu.dot_dimension_numbers<[1], [0], [0], [1], [0, 0, 1, 1], [], []>} : vector<8x128xf32>, vector<128x128xf32>, vector<8x128xf32> -> vector<8x128xf32>
    %11 = vector.broadcast %4 : vector<1x128xf32> to vector<8x128xf32>
    %12 = arith.addf %10, %11 : vector<8x128xf32>
    %cst_15 = arith.constant 0.000000e+00 : f32
    %13 = vector.broadcast %cst_15 : f32 to vector<8x128xf32>
    %14 = arith.maximumf %12, %13 : vector<8x128xf32>
    %c1_16 = arith.constant 1 : index
    %c0_17 = arith.constant 0 : index
    %c0_18 = arith.constant 0 : index
    %15 = vector.load %arg2[%c1_16, %c0_17, %c0_18] : memref<3x128x128xf32, #tpu.memory_space<vmem>>, vector<1x128x128xf32>
    %16 = vector.shape_cast %15 : vector<1x128x128xf32> to vector<128x128xf32>
    %cst_19 = arith.constant dense<0.000000e+00> : vector<8x128xf32>
    %17 = tpu.matmul %14, %16, %cst_19 {dimension_numbers = #tpu.dot_dimension_numbers<[1], [0], [0], [1], [0, 0, 1, 1], [], []>} : vector<8x128xf32>, vector<128x128xf32>, vector<8x128xf32> -> vector<8x128xf32>
    %18 = vector.broadcast %5 : vector<1x128xf32> to vector<8x128xf32>
    %19 = arith.addf %17, %18 : vector<8x128xf32>
    %cst_20 = arith.constant 0.000000e+00 : f32
    %20 = vector.broadcast %cst_20 : f32 to vector<8x128xf32>
    %21 = arith.maximumf %19, %20 : vector<8x128xf32>
    %c2_21 = arith.constant 2 : index
    %c0_22 = arith.constant 0 : index
    %c0_23 = arith.constant 0 : index
    %22 = vector.load %arg2[%c2_21, %c0_22, %c0_23] : memref<3x128x128xf32, #tpu.memory_space<vmem>>, vector<1x128x128xf32>
    %23 = vector.shape_cast %22 : vector<1x128x128xf32> to vector<128x128xf32>
    %cst_24 = arith.constant dense<0.000000e+00> : vector<8x128xf32>
    %24 = tpu.matmul %21, %23, %cst_24 {dimension_numbers = #tpu.dot_dimension_numbers<[1], [0], [0], [1], [0, 0, 1, 1], [], []>} : vector<8x128xf32>, vector<128x128xf32>, vector<8x128xf32> -> vector<8x128xf32>
    %25 = vector.broadcast %6 : vector<1x128xf32> to vector<8x128xf32>
    %26 = arith.addf %24, %25 : vector<8x128xf32>
    %27 = vector.extract_strided_slice %26 {offsets = [0, 0], sizes = [8, 10], strides = [1, 1]} : vector<8x128xf32> to vector<8x10xf32>
    %c0_25 = arith.constant 0 : index
    %c0_26 = arith.constant 0 : index
    %28 = vector.load %arg4[%c0_25, %c0_26] : memref<8x10xf32, #tpu.memory_space<vmem>>, vector<8x10xf32>
    tpu.vector_store %arg4[%c0_25, %c0_26], %27 {strides = array<i32>} : memref<8x10xf32, #tpu.memory_space<vmem>>, vector<8x10xf32>,
    return
  }
  func.func @transform_0(%arg0: i32) -> (i32, i32) {
    %c0_i32 = arith.constant 0 : i32
    %c0_i32_0 = arith.constant 0 : i32
    return %arg0, %c0_i32 : i32, i32
  }
  func.func @transform_1(%arg0: i32) -> (i32, i32, i32) {
    %c0_i32 = arith.constant 0 : i32
    %c0_i32_0 = arith.constant 0 : i32
    %c0_i32_1 = arith.constant 0 : i32
    %c0_i32_2 = arith.constant 0 : i32
    return %c0_i32, %c0_i32_0, %c0_i32_1 : i32, i32, i32
  }
  func.func @transform_2(%arg0: i32) -> (i32, i32) {
    %c0_i32 = arith.constant 0 : i32
    %c0_i32_0 = arith.constant 0 : i32
    %c0_i32_1 = arith.constant 0 : i32
    return %c0_i32, %c0_i32_0 : i32, i32
  }
  func.func @transform_3(%arg0: i32) -> (i32, i32) {
    %c0_i32 = arith.constant 0 : i32
    %c0_i32_0 = arith.constant 0 : i32
    return %arg0, %c0_i32 : i32, i32
  }
}

</mosaic_0001>

<llo_original>
// kernel: nnetwork_forward.1
$region0: #{nnetwork_forward.1}
  #allocation0 [shape = 'u32[]', space=smem, size = 0x4, offset = 0x4, fixed_abs, tag = 'smem constant byte address 0x4 - core index']
  #allocation1 [shape = 'u32[144,128]{1,0:T(1,128)}', space=vmem, size = 0x12000, scoped, tag = 'internal scratch']
  #allocation2 [shape = 'f32[8,128]{1,0:T(8,128)}', space=vmem, size = 0x1000, scoped, tag = 'scratch operand']
  %s0 = inlined_call_operand.vmem [shape: f32[8,90], index: 0, kind: input, shape index: {}]
  %s1 = inlined_call_operand.hbm [shape: f32[3,128,128], index: 1, kind: input, shape index: {}]
  %s2 = inlined_call_operand.vmem [shape: f32[8,128], index: 2, kind: input, shape index: {}]
  %s3 = inlined_call_operand.vmem [shape: f32[8,10], index: 3, kind: output, shape index: {}]
  %s4 = sld [smem:[#allocation0]]
  $region26: #{nnetwork_forward.1} parent=0
    _
  %s6 = ssub.s32 1, %s4
  %s7 = scalar_select 0, %s6, %s4
  $region1: #{nnetwork_forward.1} parent=0
    #allocation3 [shape = 'u8[196608]{0}', space=vmem, size = 0x30000, scoped, tag = 'input window, operand 1, single buffered']
    #allocation4 [shape = 's32[1]{0}', space=sflag, size = 0x4, scoped, tag = 'scoped memory for nnetwork_forward.1']
    %8 = vsyncpa [#allocation4], 0
    // Predicated region
    $region2: #{nnetwork_forward.1} parent=1 // pred_check
      _
    $region3: #{nnetwork_forward.1} parent=1 // pred_check_branch
      %10 = sbr.rel (0) target = $region5
    $region4: #{nnetwork_forward.1} parent=1 // pred_region
      _
    $region5: #{nnetwork_forward.1} parent=1 // pred_fallthru
      _
    // Predicated region
    $region6: #{nnetwork_forward.1} parent=1 // pred_check
      _
    $region7: #{nnetwork_forward.1} parent=1 // pred_check_branch
      %12 = sbr.rel (0) target = $region9
    $region8: #{nnetwork_forward.1} parent=1 // pred_region
      %s14 = ssub.s32 6144, 6144
      %15 = vsyncadd [#allocation4], %s14
      %s16 = sshll.u32 [#allocation3], 4
      %s17 = int_to_ptr.vmem [resolvable:$true] %s16
      %22 = dma.hbm_to_vmem [thread:$0]  %s1, 6144, %s17, [#allocation4], 128, 128, 8
    $region9: #{nnetwork_forward.1} parent=1 // pred_fallthru
      _
    // Predicated region
    $region10: #{nnetwork_forward.1} parent=1 // pred_check
      _
    $region11: #{nnetwork_forward.1} parent=1 // pred_check_branch
      %24 = sbr.rel (0) target = $region13
    $region12: #{nnetwork_forward.1} parent=1 // pred_region
      _
    $region13: #{nnetwork_forward.1} parent=1 // pred_fallthru
      _
    // Predicated region
    $region14: #{nnetwork_forward.1} parent=1 // pred_check
      _
    $region15: #{nnetwork_forward.1} parent=1 // pred_check_branch
      %26 = sbr.rel (0) target = $region17
    $region16: #{nnetwork_forward.1} parent=1 // pred_region
      %27 = dma.done [#allocation4], 6144
    $region17: #{nnetwork_forward.1} parent=1 // pred_fallthru
      _
    %28 = vst [vmem:[#allocation2] sm:$0xff] 0.0
    %v29 = vld [vmem:[%s0] sm:$0xff]
    %vm30 = vcmask 736256
    %31 = vst.msk [vmem:[#allocation2] sm:$0xff] %vm30, %v29
    %v32 = vld [vmem:[%s2] sm:$0x1]
    %v33 = vld [vmem:[%s2 + $0x1] sm:$0x1]
    %v34 = vld [vmem:[%s2 + $0x2] sm:$0x1]
    %v35 = vld [vmem:[#allocation2] sm:$0xff]
    %v36 = vld [vmem:[#allocation3] sm:$0xff]
    %v37 = vld [vmem:[#allocation3 + $0x8] sm:$0xff]
    %v38 = vld [vmem:[#allocation3 + $0x10] sm:$0xff]
    %v39 = vld [vmem:[#allocation3 + $0x18] sm:$0xff]
    %v40 = vld [vmem:[#allocation3 + $0x20] sm:$0xff]
    %v41 = vld [vmem:[#allocation3 + $0x28] sm:$0xff]
    %v42 = vld [vmem:[#allocation3 + $0x30] sm:$0xff]
    %v43 = vld [vmem:[#allocation3 + $0x38] sm:$0xff]
    %v44 = vld [vmem:[#allocation3 + $0x40] sm:$0xff]
    %v45 = vld [vmem:[#allocation3 + $0x48] sm:$0xff]
    %v46 = vld [vmem:[#allocation3 + $0x50] sm:$0xff]
    %v47 = vld [vmem:[#allocation3 + $0x58] sm:$0xff]
    %v48 = vld [vmem:[#allocation3 + $0x60] sm:$0xff]
    %v49 = vld [vmem:[#allocation3 + $0x68] sm:$0xff]
    %v50 = vld [vmem:[#allocation3 + $0x70] sm:$0xff]
    %v51 = vld [vmem:[#allocation3 + $0x78] sm:$0xff]
    %v52 = vlaneseq
    %v53 = vshrl.u32 %v52, 7
    %v54 = vsub.s32 0, %v53
    %v55 = vrot.slane %v32, %v54
    %56 = vmatprep.subr.mxu0 0.0
    %57 = vmatpush1.msra.mxu0 %v36
    %58 = vmatprep.subr.mxu0 0.0
    %59 = vmatpush1.msra.mxu0 %v37
    %60 = vmatprep.subr.mxu0 0.0
    %61 = vmatpush1.msra.mxu0 %v38
    %62 = vmatprep.subr.mxu0 0.0
    %63 = vmatpush1.msra.mxu0 %v39
    %64 = vmatprep.subr.mxu0 0.0
    %65 = vmatpush1.msra.mxu0 %v40
    %66 = vmatprep.subr.mxu0 0.0
    %67 = vmatpush1.msra.mxu0 %v41
    %68 = vmatprep.subr.mxu0 0.0
    %69 = vmatpush1.msra.mxu0 %v42
    %70 = vmatprep.subr.mxu0 0.0
    %71 = vmatpush1.msra.mxu0 %v43
    %72 = vmatprep.subr.mxu0 0.0
    %73 = vmatpush1.msra.mxu0 %v44
    %74 = vmatprep.subr.mxu0 0.0
    %75 = vmatpush1.msra.mxu0 %v45
    %76 = vmatprep.subr.mxu0 0.0
    %77 = vmatpush1.msra.mxu0 %v46
    %78 = vmatprep.subr.mxu0 0.0
    %79 = vmatpush1.msra.mxu0 %v47
    %80 = vmatprep.subr.mxu0 0.0
    %81 = vmatpush1.msra.mxu0 %v48
    %82 = vmatprep.subr.mxu0 0.0
    %83 = vmatpush1.msra.mxu0 %v49
    %84 = vmatprep.subr.mxu0 0.0
    %85 = vmatpush1.msra.mxu0 %v50
    %86 = vmatprep.subr.mxu0 0.0
    %87 = vmatpush1.msra.mxu0 %v51
    %88 = vmatprep.subr.mxu0 0.0
    %89 = vmatpush1.msra.mxu0 0.0
    %90 = vmatprep.subr.mxu0 0.0
    %91 = vmatpush1.msra.mxu0 0.0
    %92 = vmatprep.subr.mxu0 0.0
    %93 = vmatpush1.msra.mxu0 0.0
    %94 = vmatprep.subr.mxu0 0.0
    %95 = vmatpush1.msra.mxu0 0.0
    %96 = vmatprep.subr.mxu0 0.0
    %97 = vmatpush1.msra.mxu0 0.0
    %98 = vmatprep.subr.mxu0 0.0
    %99 = vmatpush1.msra.mxu0 0.0
    %100 = vmatprep.subr.mxu0 0.0
    %101 = vmatpush1.msra.mxu0 0.0
    %102 = vmatprep.subr.mxu0 0.0
    %103 = vmatpush1.msra.mxu0 0.0
    %104 = vmatprep.subr.mxu0 0.0
    %105 = vmatpush1.msra.mxu0 0.0
    %106 = vmatprep.subr.mxu0 0.0
    %107 = vmatpush1.msra.mxu0 0.0
    %108 = vmatprep.subr.mxu0 0.0
    %109 = vmatpush1.msra.mxu0 0.0
    %110 = vmatprep.subr.mxu0 0.0
    %111 = vmatpush1.msra.mxu0 0.0
    %112 = vmatprep.subr.mxu0 0.0
    %113 = vmatpush1.msra.mxu0 0.0
    %114 = vmatprep.subr.mxu0 0.0
    %115 = vmatpush1.msra.mxu0 0.0
    %116 = vmatprep.subr.mxu0 0.0
    %117 = vmatpush1.msra.mxu0 0.0
    %118 = vmatprep.subr.mxu0 0.0
    %119 = vmatpush1.msra.mxu0 0.0
    %120 = vmatprep.mubr.f32.mxu0 0.0
    %121 = vmatmul.mubr.f32.gmra.mrb[0].mxu0 %v35
    %v122 = vpop.f32.mrb[0].mxu0
    %v123 = vadd.f32 %v55, %v122
    %v124 = vpop.f32.mrb[0].mxu0
    %125 = vdwg.mxu0
    %v126 = vmax.f32 %v123, 0.0
    %s127 = scalar_lea.vmem [#allocation3], 128
    %v128 = vld [vmem:[%s127] sm:$0xff]
    %v129 = vld [vmem:[%s127 + $0x8] sm:$0xff]
    %v130 = vld [vmem:[%s127 + $0x10] sm:$0xff]
    %v131 = vld [vmem:[%s127 + $0x18] sm:$0xff]
    %v132 = vld [vmem:[%s127 + $0x20] sm:$0xff]
    %v133 = vld [vmem:[%s127 + $0x28] sm:$0xff]
    %v134 = vld [vmem:[%s127 + $0x30] sm:$0xff]
    %v135 = vld [vmem:[%s127 + $0x38] sm:$0xff]
    %v136 = vld [vmem:[%s127 + $0x40] sm:$0xff]
    %v137 = vld [vmem:[%s127 + $0x48] sm:$0xff]
    %v138 = vld [vmem:[%s127 + $0x50] sm:$0xff]
    %v139 = vld [vmem:[%s127 + $0x58] sm:$0xff]
    %v140 = vld [vmem:[%s127 + $0x60] sm:$0xff]
    %v141 = vld [vmem:[%s127 + $0x68] sm:$0xff]
    %v142 = vld [vmem:[%s127 + $0x70] sm:$0xff]
    %v143 = vld [vmem:[%s127 + $0x78] sm:$0xff]
    %v144 = vlaneseq
    %v145 = vshrl.u32 %v144, 7
    %v146 = vsub.s32 0, %v145
    %v147 = vrot.slane %v33, %v146
    %148 = vmatprep.subr.mxu0 0.0
    %149 = vmatpush1.msra.mxu0 %v128
    %150 = vmatprep.subr.mxu0 0.0
    %151 = vmatpush1.msra.mxu0 %v129
    %152 = vmatprep.subr.mxu0 0.0
    %153 = vmatpush1.msra.mxu0 %v130
    %154 = vmatprep.subr.mxu0 0.0
    %155 = vmatpush1.msra.mxu0 %v131
    %156 = vmatprep.subr.mxu0 0.0
    %157 = vmatpush1.msra.mxu0 %v132
    %158 = vmatprep.subr.mxu0 0.0
    %159 = vmatpush1.msra.mxu0 %v133
    %160 = vmatprep.subr.mxu0 0.0
    %161 = vmatpush1.msra.mxu0 %v134
    %162 = vmatprep.subr.mxu0 0.0
    %163 = vmatpush1.msra.mxu0 %v135
    %164 = vmatprep.subr.mxu0 0.0
    %165 = vmatpush1.msra.mxu0 %v136
    %166 = vmatprep.subr.mxu0 0.0
    %167 = vmatpush1.msra.mxu0 %v137
    %168 = vmatprep.subr.mxu0 0.0
    %169 = vmatpush1.msra.mxu0 %v138
    %170 = vmatprep.subr.mxu0 0.0
    %171 = vmatpush1.msra.mxu0 %v139
    %172 = vmatprep.subr.mxu0 0.0
    %173 = vmatpush1.msra.mxu0 %v140
    %174 = vmatprep.subr.mxu0 0.0
    %175 = vmatpush1.msra.mxu0 %v141
    %176 = vmatprep.subr.mxu0 0.0
    %177 = vmatpush1.msra.mxu0 %v142
    %178 = vmatprep.subr.mxu0 0.0
    %179 = vmatpush1.msra.mxu0 %v143
    %180 = vmatprep.subr.mxu0 0.0
    %181 = vmatpush1.msra.mxu0 0.0
    %182 = vmatprep.subr.mxu0 0.0
    %183 = vmatpush1.msra.mxu0 0.0
    %184 = vmatprep.subr.mxu0 0.0
    %185 = vmatpush1.msra.mxu0 0.0
    %186 = vmatprep.subr.mxu0 0.0
    %187 = vmatpush1.msra.mxu0 0.0
    %188 = vmatprep.subr.mxu0 0.0
    %189 = vmatpush1.msra.mxu0 0.0
    %190 = vmatprep.subr.mxu0 0.0
    %191 = vmatpush1.msra.mxu0 0.0
    %192 = vmatprep.subr.mxu0 0.0
    %193 = vmatpush1.msra.mxu0 0.0
    %194 = vmatprep.subr.mxu0 0.0
    %195 = vmatpush1.msra.mxu0 0.0
    %196 = vmatprep.subr.mxu0 0.0
    %197 = vmatpush1.msra.mxu0 0.0
    %198 = vmatprep.subr.mxu0 0.0
    %199 = vmatpush1.msra.mxu0 0.0
    %200 = vmatprep.subr.mxu0 0.0
    %201 = vmatpush1.msra.mxu0 0.0
    %202 = vmatprep.subr.mxu0 0.0
    %203 = vmatpush1.msra.mxu0 0.0
    %204 = vmatprep.subr.mxu0 0.0
    %205 = vmatpush1.msra.mxu0 0.0
    %206 = vmatprep.subr.mxu0 0.0
    %207 = vmatpush1.msra.mxu0 0.0
    %208 = vmatprep.subr.mxu0 0.0
    %209 = vmatpush1.msra.mxu0 0.0
    %210 = vmatprep.subr.mxu0 0.0
    %211 = vmatpush1.msra.mxu0 0.0
    %212 = vmatprep.mubr.f32.mxu0 0.0
    %213 = vmatmul.mubr.f32.gmra.mrb[0].mxu0 %v126
    %v214 = vpop.f32.mrb[0].mxu0
    %v215 = vadd.f32 %v147, %v214
    %v216 = vpop.f32.mrb[0].mxu0
    %217 = vdwg.mxu0
    %v218 = vmax.f32 %v215, 0.0
    %s219 = scalar_lea.vmem [#allocation3], 256
    %v220 = vld [vmem:[%s219] sm:$0xff]
    %v221 = vld [vmem:[%s219 + $0x8] sm:$0xff]
    %v222 = vld [vmem:[%s219 + $0x10] sm:$0xff]
    %v223 = vld [vmem:[%s219 + $0x18] sm:$0xff]
    %v224 = vld [vmem:[%s219 + $0x20] sm:$0xff]
    %v225 = vld [vmem:[%s219 + $0x28] sm:$0xff]
    %v226 = vld [vmem:[%s219 + $0x30] sm:$0xff]
    %v227 = vld [vmem:[%s219 + $0x38] sm:$0xff]
    %v228 = vld [vmem:[%s219 + $0x40] sm:$0xff]
    %v229 = vld [vmem:[%s219 + $0x48] sm:$0xff]
    %v230 = vld [vmem:[%s219 + $0x50] sm:$0xff]
    %v231 = vld [vmem:[%s219 + $0x58] sm:$0xff]
    %v232 = vld [vmem:[%s219 + $0x60] sm:$0xff]
    %v233 = vld [vmem:[%s219 + $0x68] sm:$0xff]
    %v234 = vld [vmem:[%s219 + $0x70] sm:$0xff]
    %v235 = vld [vmem:[%s219 + $0x78] sm:$0xff]
    %v236 = vlaneseq
    %v237 = vshrl.u32 %v236, 7
    %v238 = vsub.s32 0, %v237
    %v239 = vrot.slane %v34, %v238
    %240 = vmatprep.subr.mxu0 0.0
    %241 = vmatpush1.msra.mxu0 %v220
    %242 = vmatprep.subr.mxu0 0.0
    %243 = vmatpush1.msra.mxu0 %v221
    %244 = vmatprep.subr.mxu0 0.0
    %245 = vmatpush1.msra.mxu0 %v222
    %246 = vmatprep.subr.mxu0 0.0
    %247 = vmatpush1.msra.mxu0 %v223
    %248 = vmatprep.subr.mxu0 0.0
    %249 = vmatpush1.msra.mxu0 %v224
    %250 = vmatprep.subr.mxu0 0.0
    %251 = vmatpush1.msra.mxu0 %v225
    %252 = vmatprep.subr.mxu0 0.0
    %253 = vmatpush1.msra.mxu0 %v226
    %254 = vmatprep.subr.mxu0 0.0
    %255 = vmatpush1.msra.mxu0 %v227
    %256 = vmatprep.subr.mxu0 0.0
    %257 = vmatpush1.msra.mxu0 %v228
    %258 = vmatprep.subr.mxu0 0.0
    %259 = vmatpush1.msra.mxu0 %v229
    %260 = vmatprep.subr.mxu0 0.0
    %261 = vmatpush1.msra.mxu0 %v230
    %262 = vmatprep.subr.mxu0 0.0
    %263 = vmatpush1.msra.mxu0 %v231
    %264 = vmatprep.subr.mxu0 0.0
    %265 = vmatpush1.msra.mxu0 %v232
    %266 = vmatprep.subr.mxu0 0.0
    %267 = vmatpush1.msra.mxu0 %v233
    %268 = vmatprep.subr.mxu0 0.0
    %269 = vmatpush1.msra.mxu0 %v234
    %270 = vmatprep.subr.mxu0 0.0
    %271 = vmatpush1.msra.mxu0 %v235
    %272 = vmatprep.subr.mxu0 0.0
    %273 = vmatpush1.msra.mxu0 0.0
    %274 = vmatprep.subr.mxu0 0.0
    %275 = vmatpush1.msra.mxu0 0.0
    %276 = vmatprep.subr.mxu0 0.0
    %277 = vmatpush1.msra.mxu0 0.0
    %278 = vmatprep.subr.mxu0 0.0
    %279 = vmatpush1.msra.mxu0 0.0
    %280 = vmatprep.subr.mxu0 0.0
    %281 = vmatpush1.msra.mxu0 0.0
    %282 = vmatprep.subr.mxu0 0.0
    %283 = vmatpush1.msra.mxu0 0.0
    %284 = vmatprep.subr.mxu0 0.0
    %285 = vmatpush1.msra.mxu0 0.0
    %286 = vmatprep.subr.mxu0 0.0
    %287 = vmatpush1.msra.mxu0 0.0
    %288 = vmatprep.subr.mxu0 0.0
    %289 = vmatpush1.msra.mxu0 0.0
    %290 = vmatprep.subr.mxu0 0.0
    %291 = vmatpush1.msra.mxu0 0.0
    %292 = vmatprep.subr.mxu0 0.0
    %293 = vmatpush1.msra.mxu0 0.0
    %294 = vmatprep.subr.mxu0 0.0
    %295 = vmatpush1.msra.mxu0 0.0
    %296 = vmatprep.subr.mxu0 0.0
    %297 = vmatpush1.msra.mxu0 0.0
    %298 = vmatprep.subr.mxu0 0.0
    %299 = vmatpush1.msra.mxu0 0.0
    %300 = vmatprep.subr.mxu0 0.0
    %301 = vmatpush1.msra.mxu0 0.0
    %302 = vmatprep.subr.mxu0 0.0
    %303 = vmatpush1.msra.mxu0 0.0
    %304 = vmatprep.mubr.f32.mxu0 0.0
    %305 = vmatmul.mubr.f32.gmra.mrb[0].mxu0 %v218
    %v306 = vpop.f32.mrb[0].mxu0
    %v307 = vadd.f32 %v239, %v306
    %v308 = vpop.f32.mrb[0].mxu0
    %309 = vdwg.mxu0
    %vm310 = vcmask 80896
    %311 = vst.msk [vmem:[%s3] sm:$0xff] %vm310, %v307
    // Predicated region
    $region18: #{nnetwork_forward.1} parent=1 // pred_check
      _
    $region19: #{nnetwork_forward.1} parent=1 // pred_check_branch
      %313 = sbr.rel (0) target = $region21
    $region20: #{nnetwork_forward.1} parent=1 // pred_region
      _
    $region21: #{nnetwork_forward.1} parent=1 // pred_fallthru
      _
    // Predicated region
    $region22: #{nnetwork_forward.1} parent=1 // pred_check
      _
    $region23: #{nnetwork_forward.1} parent=1 // pred_check_branch
      %315 = sbr.rel (0) target = $region25
    $region24: #{nnetwork_forward.1} parent=1 // pred_region
      _
    $region25: #{nnetwork_forward.1} parent=1 // pred_fallthru
      _
    %316 = vsyncpa [#allocation4], 1

</llo_original>
